<compile_context>
chip_gen: v7x
topology: tpu7x:2x2x1
jax: 0.10.0
libtpu: 0.0.40
codegen_flags: <defaults>
</compile_context>

<pallas_src>
import functools

import jax
import jax.numpy as jnp
from jax.experimental import pallas as pl
from jax.experimental.pallas import tpu as pltpu


def _round_up(x, m):
    return ((x + m - 1) // m) * m


def _graph_conv_kernel(*refs, pre_project, has_bias):
    """One (row-tile i, K-tile k) step of relu(adj @ seq @ W.T [+ b])."""
    if has_bias:
        adj_ref, seq_ref, wt_ref, b_ref, out_ref, acc_ref = refs
    else:
        adj_ref, seq_ref, wt_ref, out_ref, acc_ref = refs
        b_ref = None

    k = pl.program_id(1)

    @pl.when(k == 0)
    def _init():
        acc_ref[...] = jnp.zeros_like(acc_ref)

    if pre_project:
        # Module order: h_k = seq_k @ W.T, acc += adj_ik @ h_k.
        h = jnp.dot(seq_ref[...], wt_ref[...],
                    preferred_element_type=jnp.float32)
        acc_ref[...] += jnp.dot(adj_ref[...], h.astype(seq_ref.dtype),
                                preferred_element_type=jnp.float32)
    else:
        # Reassociated order: acc += adj_ik @ seq_k  (project once in epilogue).
        acc_ref[...] += jnp.dot(adj_ref[...], seq_ref[...],
                                preferred_element_type=jnp.float32)

    @pl.when(k == pl.num_programs(1) - 1)
    def _finalize():
        if pre_project:
            res = acc_ref[...]
        else:
            # Per-row-tile projection epilogue: (tm, in_p) @ (in_p, out_p).
            res = jnp.dot(acc_ref[...].astype(wt_ref.dtype), wt_ref[...],
                          preferred_element_type=jnp.float32)
        if has_bias:
            res = res + b_ref[...]
        out_ref[...] = jnp.maximum(res, 0.0).astype(out_ref.dtype)


def graph_conv_forward(seq, adj, weight, bias=None):
    """seq: (N, in_dim), adj: (N, N) dense, weight: (out_dim, in_dim) -> (N, out_dim)."""
    N, in_dim = seq.shape
    out_dim, in_dim_w = weight.shape
    assert in_dim_w == in_dim
    dtype = seq.dtype

    # Row/K tile: 256 fills the v6e/v7x 256-wide MXU; 128 already fills v5e's.
    tile = 256 if N >= 256 else 128
    tm = tk = tile
    n_pad = _round_up(N, tile)
    in_p = _round_up(in_dim, 128)    # lane-dense seq / W.T rows
    outp = _round_up(out_dim, 128)   # lane-dense output stores (no masked vst)

    n_row_tiles = n_pad // tm
    k_tiles = n_pad // tk

    # Trace-time association choice by padded-FLOP estimate.  The module-order
    # fused path recomputes seq_k @ W.T once per row tile, which the formula
    # accounts for (this was the main perf fix vs. the previous in>out heuristic).
    cost_reassoc = n_pad * n_pad * in_p + n_pad * in_p * outp
    cost_preproj = n_pad * n_pad * outp + n_row_tiles * n_pad * in_p * outp
    pre_project = cost_preproj < cost_reassoc
    acc_cols = outp if pre_project else in_p

    # Layout plumbing (padding + one-time W transpose) done once in the wrapper.
    seq_p = jnp.pad(seq, ((0, n_pad - N), (0, in_p - in_dim)))
    adj_p = jnp.pad(adj, ((0, n_pad - N), (0, n_pad - N)))
    wt_p = jnp.pad(weight.T.astype(dtype),
                   ((0, in_p - in_dim), (0, outp - out_dim)))

    has_bias = bias is not None
    inputs = [adj_p, seq_p, wt_p]
    in_specs = [
        pl.BlockSpec((tm, tk), lambda i, k: (i, k)),        # adj tile
        pl.BlockSpec((tk, in_p), lambda i, k: (k, 0)),      # seq K-strip
        pl.BlockSpec((in_p, outp), lambda i, k: (0, 0)),    # W.T (stays resident)
    ]
    if has_bias:
        b_p = jnp.zeros((1, outp), jnp.float32).at[0, :out_dim].set(
            bias.astype(jnp.float32))
        inputs.append(b_p)
        in_specs.append(pl.BlockSpec((1, outp), lambda i, k: (0, 0)))

    out_padded = pl.pallas_call(
        functools.partial(_graph_conv_kernel,
                          pre_project=pre_project, has_bias=has_bias),
        out_shape=jax.ShapeDtypeStruct((n_pad, outp), dtype),
        grid_spec=pltpu.PrefetchScalarGridSpec(
            num_scalar_prefetch=0,
            grid=(n_row_tiles, k_tiles),
            in_specs=in_specs,
            out_specs=pl.BlockSpec((tm, outp), lambda i, k: (i, 0)),
            scratch_shapes=[pltpu.VMEM((tm, acc_cols), jnp.float32)],
        ),
        compiler_params=pltpu.CompilerParams(
            # Row tiles shard across TensorCores (v7x megacore); K is a reduction.
            dimension_semantics=("parallel", "arbitrary"),
        ),
    )(*inputs)

    return out_padded[:N, :out_dim]


def _make_adj(key, n):
    a = (jax.random.uniform(key, (n, n)) > 0.8).astype(jnp.float32)
    a = jnp.maximum(a, a.T) + jnp.eye(n, dtype=jnp.float32)
    deg = jnp.sum(a, axis=1, keepdims=True)
    return a / deg


if __name__ == "__main__":
    key = jax.random.PRNGKey(0)

    # ---- Case 1: module defaults (bias=False), in_dim < out_dim -> reassociated path.
    N, in_dim, out_dim = 64, 32, 64
    k_seq, k_adj, k_w, key = jax.random.split(key, 4)
    seq = jax.random.normal(k_seq, (N, in_dim), dtype=jnp.float32)
    adj = _make_adj(k_adj, N)
    gain = 1.414
    std = gain * (2.0 / (in_dim + out_dim)) ** 0.5
    weight = std * jax.random.normal(k_w, (out_dim, in_dim), dtype=jnp.float32)

    out = jax.block_until_ready(graph_conv_forward(seq, adj, weight))
    assert out.shape == (N, out_dim)
    ref_same = jnp.maximum((adj @ seq) @ weight.T, 0.0)       # kernel's association
    ref_module = jnp.maximum(adj @ (seq @ weight.T), 0.0)     # module order
    assert jnp.allclose(out, ref_same, atol=1e-3, rtol=1e-3), \
        float(jnp.max(jnp.abs(out - ref_same)))
    assert jnp.allclose(out, ref_module, atol=1e-2, rtol=1e-2), \
        float(jnp.max(jnp.abs(out - ref_module)))

    # ---- Case 2: bias=True, in_dim > out_dim, single row tile -> module-order path.
    N2, in2, out2 = 96, 200, 96
    k_seq2, k_adj2, k_w2, k_b2 = jax.random.split(key, 4)
    seq2 = jax.random.normal(k_seq2, (N2, in2), dtype=jnp.float32)
    adj2 = _make_adj(k_adj2, N2)
    std2 = gain * (2.0 / (in2 + out2)) ** 0.5
    weight2 = std2 * jax.random.normal(k_w2, (out2, in2), dtype=jnp.float32)
    bias2 = 0.1 * jax.random.normal(k_b2, (out2,), dtype=jnp.float32)

    out2_arr = jax.block_until_ready(graph_conv_forward(seq2, adj2, weight2, bias2))
    assert out2_arr.shape == (N2, out2)
    ref2_module = jnp.maximum(adj2 @ (seq2 @ weight2.T) + bias2, 0.0)
    ref2_reassoc = jnp.maximum((adj2 @ seq2) @ weight2.T + bias2, 0.0)
    assert jnp.allclose(out2_arr, ref2_module, atol=2e-3, rtol=2e-3), \
        float(jnp.max(jnp.abs(out2_arr - ref2_module)))
    assert jnp.allclose(out2_arr, ref2_reassoc, atol=1e-2, rtol=1e-2), \
        float(jnp.max(jnp.abs(out2_arr - ref2_reassoc)))

    print("KERNEL_OK")
</pallas_src>

<mosaic_0001>
module attributes {stable_mosaic.version = 11 : i64} {
  func.func @_graph_conv_kernel(%arg0: i32, %arg1: i32, %arg2: memref<128x128xf32, #tpu.memory_space<vmem>>, %arg3: memref<128x128xf32, #tpu.memory_space<vmem>>, %arg4: memref<128x128xf32, #tpu.memory_space<vmem>>, %arg5: memref<128x128xf32, #tpu.memory_space<vmem>>, %arg6: memref<128x128xf32, #tpu.memory_space<vmem>>) attributes {dimension_semantics = [#tpu.dimension_semantics<parallel>, #tpu.dimension_semantics<arbitrary>], iteration_bounds = array<i64: 1, 1>, scalar_prefetch = 0 : i64, scratch_operands = 1 : i64, tpu.core_type = #tpu.core_type<tc>, window_params = [{transform_indices = @transform_0, window_bounds = array<i64: 128, 128>}, {transform_indices = @transform_1, window_bounds = array<i64: 128, 128>}, {pipeline_mode = #tpu.pipeline_mode<synchronous>, transform_indices = @transform_2, window_bounds = array<i64: 128, 128>}, {transform_indices = @transform_3, window_bounds = array<i64: 128, 128>}]} {
    %c0_i32 = arith.constant 0 : i32
    %0 = arith.cmpi eq, %arg1, %c0_i32 : i32
    %1 = arith.extui %0 : i1 to i32
    %c0_i32_0 = arith.constant 0 : i32
    %2 = arith.cmpi ne, %1, %c0_i32_0 : i32
    scf.if %2 {
      %cst_10 = arith.constant 0.000000e+00 : f32
      %12 = vector.broadcast %cst_10 : f32 to vector<128x128xf32>
      %c0_11 = arith.constant 0 : index
      %c0_12 = arith.constant 0 : index
      %13 = vector.load %arg6[%c0_11, %c0_12] : memref<128x128xf32, #tpu.memory_space<vmem>>, vector<128x128xf32>
      tpu.vector_store %arg6[%c0_11, %c0_12], %12 {strides = array<i32>} : memref<128x128xf32, #tpu.memory_space<vmem>>, vector<128x128xf32>,
    } else {
    }
    %c0 = arith.constant 0 : index
    %c0_1 = arith.constant 0 : index
    %3 = vector.load %arg6[%c0, %c0_1] : memref<128x128xf32, #tpu.memory_space<vmem>>, vector<128x128xf32>
    %c0_2 = arith.constant 0 : index
    %c0_3 = arith.constant 0 : index
    %4 = vector.load %arg2[%c0_2, %c0_3] : memref<128x128xf32, #tpu.memory_space<vmem>>, vector<128x128xf32>
    %c0_4 = arith.constant 0 : index
    %c0_5 = arith.constant 0 : index
    %5 = vector.load %arg3[%c0_4, %c0_5] : memref<128x128xf32, #tpu.memory_space<vmem>>, vector<128x128xf32>
    %cst = arith.constant dense<0.000000e+00> : vector<128x128xf32>
    %6 = tpu.matmul %4, %5, %cst {dimension_numbers = #tpu.dot_dimension_numbers<[1], [0], [0], [1], [0, 0, 1, 1], [], []>} : vector<128x128xf32>, vector<128x128xf32>, vector<128x128xf32> -> vector<128x128xf32>
    %7 = arith.addf %3, %6 : vector<128x128xf32>
    %c0_6 = arith.constant 0 : index
    %c0_7 = arith.constant 0 : index
    %8 = vector.load %arg6[%c0_6, %c0_7] : memref<128x128xf32, #tpu.memory_space<vmem>>, vector<128x128xf32>
    tpu.vector_store %arg6[%c0_6, %c0_7], %7 {strides = array<i32>} : memref<128x128xf32, #tpu.memory_space<vmem>>, vector<128x128xf32>,
    %c0_i32_8 = arith.constant 0 : i32
    %9 = arith.cmpi eq, %arg1, %c0_i32_8 : i32
    %10 = arith.extui %9 : i1 to i32
    %c0_i32_9 = arith.constant 0 : i32
    %11 = arith.cmpi ne, %10, %c0_i32_9 : i32
    scf.if %11 {
      %c0_10 = arith.constant 0 : index
      %c0_11 = arith.constant 0 : index
      %12 = vector.load %arg6[%c0_10, %c0_11] : memref<128x128xf32, #tpu.memory_space<vmem>>, vector<128x128xf32>
      %c0_12 = arith.constant 0 : index
      %c0_13 = arith.constant 0 : index
      %13 = vector.load %arg4[%c0_12, %c0_13] : memref<128x128xf32, #tpu.memory_space<vmem>>, vector<128x128xf32>
      %cst_14 = arith.constant dense<0.000000e+00> : vector<128x128xf32>
      %14 = tpu.matmul %12, %13, %cst_14 {dimension_numbers = #tpu.dot_dimension_numbers<[1], [0], [0], [1], [0, 0, 1, 1], [], []>} : vector<128x128xf32>, vector<128x128xf32>, vector<128x128xf32> -> vector<128x128xf32>
      %cst_15 = arith.constant 0.000000e+00 : f32
      %15 = vector.broadcast %cst_15 : f32 to vector<128x128xf32>
      %16 = arith.maximumf %14, %15 : vector<128x128xf32>
      %c0_16 = arith.constant 0 : index
      %c0_17 = arith.constant 0 : index
      %17 = vector.load %arg5[%c0_16, %c0_17] : memref<128x128xf32, #tpu.memory_space<vmem>>, vector<128x128xf32>
      tpu.vector_store %arg5[%c0_16, %c0_17], %16 {strides = array<i32>} : memref<128x128xf32, #tpu.memory_space<vmem>>, vector<128x128xf32>,
    } else {
    }
    return
  }
  func.func @transform_0(%arg0: i32, %arg1: i32) -> (i32, i32) {
    %c0_i32 = arith.constant 0 : i32
    return %arg0, %arg1 : i32, i32
  }
  func.func @transform_1(%arg0: i32, %arg1: i32) -> (i32, i32) {
    %c0_i32 = arith.constant 0 : i32
    %c0_i32_0 = arith.constant 0 : i32
    return %arg1, %c0_i32 : i32, i32
  }
  func.func @transform_2(%arg0: i32, %arg1: i32) -> (i32, i32) {
    %c0_i32 = arith.constant 0 : i32
    %c0_i32_0 = arith.constant 0 : i32
    %c0_i32_1 = arith.constant 0 : i32
    return %c0_i32, %c0_i32_0 : i32, i32
  }
  func.func @transform_3(%arg0: i32, %arg1: i32) -> (i32, i32) {
    %c0_i32 = arith.constant 0 : i32
    %c0_i32_0 = arith.constant 0 : i32
    return %arg0, %c0_i32 : i32, i32
  }
}

</mosaic_0001>

<llo_original>
// kernel: tpu_custom_call.1
$region0: #{tpu_custom_call.1}
  #allocation0 [shape = 'u32[]', space=smem, size = 0x4, offset = 0x4, fixed_abs, tag = 'smem constant byte address 0x4 - core index']
  #allocation1 [shape = 'u32[144,128]{1,0:T(1,128)}', space=vmem, size = 0x12000, scoped, tag = 'internal scratch']
  #allocation2 [shape = 'f32[128,128]{1,0:T(8,128)}', space=vmem, size = 0x10000, scoped, tag = 'scratch operand']
  %s0 = inlined_call_operand.hbm [shape: f32[128,128], index: 0, kind: input, shape index: {}]
  %s1 = inlined_call_operand.hbm [shape: f32[128,128], index: 1, kind: input, shape index: {}]
  %s2 = inlined_call_operand.hbm [shape: f32[128,128], index: 2, kind: input, shape index: {}]
  %s3 = inlined_call_operand.hbm [shape: f32[128,128], index: 3, kind: output, shape index: {}]
  %s4 = sld [smem:[#allocation0]]
  $region42: #{tpu_custom_call.1} parent=0
    _
  %s6 = ssub.s32 1, %s4
  %s7 = scalar_select 0, %s6, %s4
  $region1: #{tpu_custom_call.1} parent=0
    #allocation3 [shape = 'u8[65536]{0}', space=vmem, size = 0x10000, scoped, tag = 'input window, operand 0, single buffered']
    #allocation4 [shape = 's32[1]{0}', space=sflag, size = 0x4, scoped, tag = 'scoped memory for tpu_custom_call.1']
    #allocation5 [shape = 's32[1]{0}', space=sflag, size = 0x4, scoped, tag = 'scoped memory for tpu_custom_call.1']
    #allocation6 [shape = 'u8[65536]{0}', space=vmem, size = 0x10000, scoped, tag = 'input window, operand 1, single buffered']
    #allocation7 [shape = 's32[1]{0}', space=sflag, size = 0x4, scoped, tag = 'scoped memory for tpu_custom_call.1']
    #allocation8 [shape = 'u8[65536]{0}', space=vmem, size = 0x10000, scoped, tag = 'input window, operand 2, single buffered']
    #allocation9 [shape = 'u8[65536]{0}', space=vmem, size = 0x10000, scoped, tag = 'output window, operand 0, single buffered']
    %8 = vsyncpa [#allocation4], 0
    %9 = vsyncpa [#allocation7], 0
    %10 = vsyncpa [#allocation5], 0
    // Predicated region
    $region2: #{tpu_custom_call.1} parent=1 // pred_check
      _
    $region3: #{tpu_custom_call.1} parent=1 // pred_check_branch
      %12 = sbr.rel (0) target = $region5
    $region4: #{tpu_custom_call.1} parent=1 // pred_region
      %s14 = ssub.s32 2048, 2048
      %15 = vsyncadd [#allocation4], %s14
      %s16 = sshll.u32 [#allocation3], 4
      %s17 = int_to_ptr.vmem [resolvable:$true] %s16
      %22 = dma.hbm_to_vmem [thread:$0]  %s0, 2048, %s17, [#allocation4], 128, 128, 8
    $region5: #{tpu_custom_call.1} parent=1 // pred_fallthru
      _
    // Predicated region
    $region6: #{tpu_custom_call.1} parent=1 // pred_check
      _
    $region7: #{tpu_custom_call.1} parent=1 // pred_check_branch
      %24 = sbr.rel (0) target = $region9
    $region8: #{tpu_custom_call.1} parent=1 // pred_region
      %s26 = ssub.s32 2048, 2048
      %27 = vsyncadd [#allocation7], %s26
      %s28 = sshll.u32 [#allocation6], 4
      %s29 = int_to_ptr.vmem [resolvable:$true] %s28
      %34 = dma.hbm_to_vmem [thread:$0]  %s1, 2048, %s29, [#allocation7], 128, 128, 8
    $region9: #{tpu_custom_call.1} parent=1 // pred_fallthru
      _
    // Predicated region
    $region10: #{tpu_custom_call.1} parent=1 // pred_check
      _
    $region11: #{tpu_custom_call.1} parent=1 // pred_check_branch
      %36 = sbr.rel (0) target = $region13
    $region12: #{tpu_custom_call.1} parent=1 // pred_region
      %s38 = ssub.s32 2048, 2048
      %39 = vsyncadd [#allocation7], %s38
      %s40 = sshll.u32 [#allocation8], 4
      %s41 = int_to_ptr.vmem [resolvable:$true] %s40
      %46 = dma.hbm_to_vmem [thread:$0]  %s2, 2048, %s41, [#allocation7], 128, 128, 8
    $region13: #{tpu_custom_call.1} parent=1 // pred_fallthru
      _
    // Predicated region
    $region14: #{tpu_custom_call.1} parent=1 // pred_check
      _
    $region15: #{tpu_custom_call.1} parent=1 // pred_check_branch
      %48 = sbr.rel (0) target = $region17
    $region16: #{tpu_custom_call.1} parent=1 // pred_region
      %49 = dma.done [#allocation4], 2048
    $region17: #{tpu_custom_call.1} parent=1 // pred_fallthru
      _
    // Predicated region
    $region18: #{tpu_custom_call.1} parent=1 // pred_check
      _
    $region19: #{tpu_custom_call.1} parent=1 // pred_check_branch
      %51 = sbr.rel (0) target = $region21
    $region20: #{tpu_custom_call.1} parent=1 // pred_region
      %52 = dma.done [#allocation7], 2048
    $region21: #{tpu_custom_call.1} parent=1 // pred_fallthru
      _
    // Predicated region
    $region22: #{tpu_custom_call.1} parent=1 // pred_check
      _
    $region23: #{tpu_custom_call.1} parent=1 // pred_check_branch
      %54 = sbr.rel (0) target = $region25
    $region24: #{tpu_custom_call.1} parent=1 // pred_region
      %55 = dma.done [#allocation7], 2048
    $region25: #{tpu_custom_call.1} parent=1 // pred_fallthru
      _
    %p56 = scmp.eq.s32.totalorder 0, 0
    // Predicated region
    $region26: #{tpu_custom_call.1} parent=1 // pred_check
      %p57 = pneg %p56
    $region27: #{tpu_custom_call.1} parent=1 // pred_check_branch
      %59 = sbr.rel (%p57) target = $region29
    $region28: #{tpu_custom_call.1} parent=1 // pred_region
      %60 = vst [vmem:[#allocation2] sm:$0xff] 0.0
      %61 = vst [vmem:[#allocation2 + $0x8] sm:$0xff] 0.0
      %62 = vst [vmem:[#allocation2 + $0x10] sm:$0xff] 0.0
      %63 = vst [vmem:[#allocation2 + $0x18] sm:$0xff] 0.0
      %64 = vst [vmem:[#allocation2 + $0x20] sm:$0xff] 0.0
      %65 = vst [vmem:[#allocation2 + $0x28] sm:$0xff] 0.0
      %66 = vst [vmem:[#allocation2 + $0x30] sm:$0xff] 0.0
      %67 = vst [vmem:[#allocation2 + $0x38] sm:$0xff] 0.0
      %68 = vst [vmem:[#allocation2 + $0x40] sm:$0xff] 0.0
      %69 = vst [vmem:[#allocation2 + $0x48] sm:$0xff] 0.0
      %70 = vst [vmem:[#allocation2 + $0x50] sm:$0xff] 0.0
      %71 = vst [vmem:[#allocation2 + $0x58] sm:$0xff] 0.0
      %72 = vst [vmem:[#allocation2 + $0x60] sm:$0xff] 0.0
      %73 = vst [vmem:[#allocation2 + $0x68] sm:$0xff] 0.0
      %74 = vst [vmem:[#allocation2 + $0x70] sm:$0xff] 0.0
      %75 = vst [vmem:[#allocation2 + $0x78] sm:$0xff] 0.0
    $region29: #{tpu_custom_call.1} parent=1 // pred_fallthru
      _
    %v76 = vld [vmem:[#allocation2] sm:$0xff]
    %v77 = vld [vmem:[#allocation2 + $0x8] sm:$0xff]
    %v78 = vld [vmem:[#allocation2 + $0x10] sm:$0xff]
    %v79 = vld [vmem:[#allocation2 + $0x18] sm:$0xff]
    %v80 = vld [vmem:[#allocation2 + $0x20] sm:$0xff]
    %v81 = vld [vmem:[#allocation2 + $0x28] sm:$0xff]
    %v82 = vld [vmem:[#allocation2 + $0x30] sm:$0xff]
    %v83 = vld [vmem:[#allocation2 + $0x38] sm:$0xff]
    %v84 = vld [vmem:[#allocation2 + $0x40] sm:$0xff]
    %v85 = vld [vmem:[#allocation2 + $0x48] sm:$0xff]
    %v86 = vld [vmem:[#allocation2 + $0x50] sm:$0xff]
    %v87 = vld [vmem:[#allocation2 + $0x58] sm:$0xff]
    %v88 = vld [vmem:[#allocation2 + $0x60] sm:$0xff]
    %v89 = vld [vmem:[#allocation2 + $0x68] sm:$0xff]
    %v90 = vld [vmem:[#allocation2 + $0x70] sm:$0xff]
    %v91 = vld [vmem:[#allocation2 + $0x78] sm:$0xff]
    %v92 = vld [vmem:[#allocation3] sm:$0xff]
    %v93 = vld [vmem:[#allocation3 + $0x8] sm:$0xff]
    %v94 = vld [vmem:[#allocation3 + $0x10] sm:$0xff]
    %v95 = vld [vmem:[#allocation3 + $0x18] sm:$0xff]
    %v96 = vld [vmem:[#allocation3 + $0x20] sm:$0xff]
    %v97 = vld [vmem:[#allocation3 + $0x28] sm:$0xff]
    %v98 = vld [vmem:[#allocation3 + $0x30] sm:$0xff]
    %v99 = vld [vmem:[#allocation3 + $0x38] sm:$0xff]
    %v100 = vld [vmem:[#allocation3 + $0x40] sm:$0xff]
    %v101 = vld [vmem:[#allocation3 + $0x48] sm:$0xff]
    %v102 = vld [vmem:[#allocation3 + $0x50] sm:$0xff]
    %v103 = vld [vmem:[#allocation3 + $0x58] sm:$0xff]
    %v104 = vld [vmem:[#allocation3 + $0x60] sm:$0xff]
    %v105 = vld [vmem:[#allocation3 + $0x68] sm:$0xff]
    %v106 = vld [vmem:[#allocation3 + $0x70] sm:$0xff]
    %v107 = vld [vmem:[#allocation3 + $0x78] sm:$0xff]
    %v108 = vld [vmem:[#allocation6] sm:$0xff]
    %v109 = vld [vmem:[#allocation6 + $0x8] sm:$0xff]
    %v110 = vld [vmem:[#allocation6 + $0x10] sm:$0xff]
    %v111 = vld [vmem:[#allocation6 + $0x18] sm:$0xff]
    %v112 = vld [vmem:[#allocation6 + $0x20] sm:$0xff]
    %v113 = vld [vmem:[#allocation6 + $0x28] sm:$0xff]
    %v114 = vld [vmem:[#allocation6 + $0x30] sm:$0xff]
    %v115 = vld [vmem:[#allocation6 + $0x38] sm:$0xff]
    %v116 = vld [vmem:[#allocation6 + $0x40] sm:$0xff]
    %v117 = vld [vmem:[#allocation6 + $0x48] sm:$0xff]
    %v118 = vld [vmem:[#allocation6 + $0x50] sm:$0xff]
    %v119 = vld [vmem:[#allocation6 + $0x58] sm:$0xff]
    %v120 = vld [vmem:[#allocation6 + $0x60] sm:$0xff]
    %v121 = vld [vmem:[#allocation6 + $0x68] sm:$0xff]
    %v122 = vld [vmem:[#allocation6 + $0x70] sm:$0xff]
    %v123 = vld [vmem:[#allocation6 + $0x78] sm:$0xff]
    %124 = vmatprep.subr.mxu0 0.0
    %125 = vmatpush1.msra.mxu0 %v108
    %126 = vmatprep.subr.mxu0 0.0
    %127 = vmatpush1.msra.mxu0 %v109
    %128 = vmatprep.subr.mxu0 0.0
    %129 = vmatpush1.msra.mxu0 %v110
    %130 = vmatprep.subr.mxu0 0.0
    %131 = vmatpush1.msra.mxu0 %v111
    %132 = vmatprep.subr.mxu0 0.0
    %133 = vmatpush1.msra.mxu0 %v112
    %134 = vmatprep.subr.mxu0 0.0
    %135 = vmatpush1.msra.mxu0 %v113
    %136 = vmatprep.subr.mxu0 0.0
    %137 = vmatpush1.msra.mxu0 %v114
    %138 = vmatprep.subr.mxu0 0.0
    %139 = vmatpush1.msra.mxu0 %v115
    %140 = vmatprep.subr.mxu0 0.0
    %141 = vmatpush1.msra.mxu0 %v116
    %142 = vmatprep.subr.mxu0 0.0
    %143 = vmatpush1.msra.mxu0 %v117
    %144 = vmatprep.subr.mxu0 0.0
    %145 = vmatpush1.msra.mxu0 %v118
    %146 = vmatprep.subr.mxu0 0.0
    %147 = vmatpush1.msra.mxu0 %v119
    %148 = vmatprep.subr.mxu0 0.0
    %149 = vmatpush1.msra.mxu0 %v120
    %150 = vmatprep.subr.mxu0 0.0
    %151 = vmatpush1.msra.mxu0 %v121
    %152 = vmatprep.subr.mxu0 0.0
    %153 = vmatpush1.msra.mxu0 %v122
    %154 = vmatprep.subr.mxu0 0.0
    %155 = vmatpush1.msra.mxu0 %v123
    %156 = vmatprep.subr.mxu0 0.0
    %157 = vmatpush1.msra.mxu0 0.0
    %158 = vmatprep.subr.mxu0 0.0
    %159 = vmatpush1.msra.mxu0 0.0
    %160 = vmatprep.subr.mxu0 0.0
    %161 = vmatpush1.msra.mxu0 0.0
    %162 = vmatprep.subr.mxu0 0.0
    %163 = vmatpush1.msra.mxu0 0.0
    %164 = vmatprep.subr.mxu0 0.0
    %165 = vmatpush1.msra.mxu0 0.0
    %166 = vmatprep.subr.mxu0 0.0
    %167 = vmatpush1.msra.mxu0 0.0
    %168 = vmatprep.subr.mxu0 0.0
    %169 = vmatpush1.msra.mxu0 0.0
    %170 = vmatprep.subr.mxu0 0.0
    %171 = vmatpush1.msra.mxu0 0.0
    %172 = vmatprep.subr.mxu0 0.0
    %173 = vmatpush1.msra.mxu0 0.0
    %174 = vmatprep.subr.mxu0 0.0
    %175 = vmatpush1.msra.mxu0 0.0
    %176 = vmatprep.subr.mxu0 0.0
    %177 = vmatpush1.msra.mxu0 0.0
    %178 = vmatprep.subr.mxu0 0.0
    %179 = vmatpush1.msra.mxu0 0.0
    %180 = vmatprep.subr.mxu0 0.0
    %181 = vmatpush1.msra.mxu0 0.0
    %182 = vmatprep.subr.mxu0 0.0
    %183 = vmatpush1.msra.mxu0 0.0
    %184 = vmatprep.subr.mxu0 0.0
    %185 = vmatpush1.msra.mxu0 0.0
    %186 = vmatprep.subr.mxu0 0.0
    %187 = vmatpush1.msra.mxu0 0.0
    %188 = vmatprep.mubr.f32.mxu0 0.0
    %189 = vmatmul.mubr.f32.gmra.mrb[0].mxu0 %v92
    %v190 = vpop.f32.mrb[0].mxu0
    %v191 = vadd.f32 0.0, %v190
    %v192 = vpop.f32.mrb[0].mxu0
    %193 = vmatprep.mubr.f32.mxu0 0.0
    %194 = vmatmul.mubr.f32.gmra.mrb[0].mxu0 %v93
    %v195 = vpop.f32.mrb[0].mxu0
    %v196 = vadd.f32 0.0, %v195
    %v197 = vpop.f32.mrb[0].mxu0
    %198 = vmatprep.mubr.f32.mxu0 0.0
    %199 = vmatmul.mubr.f32.gmra.mrb[0].mxu0 %v94
    %v200 = vpop.f32.mrb[0].mxu0
    %v201 = vadd.f32 0.0, %v200
    %v202 = vpop.f32.mrb[0].mxu0
    %203 = vmatprep.mubr.f32.mxu0 0.0
    %204 = vmatmul.mubr.f32.gmra.mrb[0].mxu0 %v95
    %v205 = vpop.f32.mrb[0].mxu0
    %v206 = vadd.f32 0.0, %v205
    %v207 = vpop.f32.mrb[0].mxu0
    %208 = vmatprep.mubr.f32.mxu0 0.0
    %209 = vmatmul.mubr.f32.gmra.mrb[0].mxu0 %v96
    %v210 = vpop.f32.mrb[0].mxu0
    %v211 = vadd.f32 0.0, %v210
    %v212 = vpop.f32.mrb[0].mxu0
    %213 = vmatprep.mubr.f32.mxu0 0.0
    %214 = vmatmul.mubr.f32.gmra.mrb[0].mxu0 %v97
    %v215 = vpop.f32.mrb[0].mxu0
    %v216 = vadd.f32 0.0, %v215
    %v217 = vpop.f32.mrb[0].mxu0
    %218 = vmatprep.mubr.f32.mxu0 0.0
    %219 = vmatmul.mubr.f32.gmra.mrb[0].mxu0 %v98
    %v220 = vpop.f32.mrb[0].mxu0
    %v221 = vadd.f32 0.0, %v220
    %v222 = vpop.f32.mrb[0].mxu0
    %223 = vmatprep.mubr.f32.mxu0 0.0
    %224 = vmatmul.mubr.f32.gmra.mrb[0].mxu0 %v99
    %v225 = vpop.f32.mrb[0].mxu0
    %v226 = vadd.f32 0.0, %v225
    %v227 = vpop.f32.mrb[0].mxu0
    %228 = vmatprep.mubr.f32.mxu0 0.0
    %229 = vmatmul.mubr.f32.gmra.mrb[0].mxu0 %v100
    %v230 = vpop.f32.mrb[0].mxu0
    %v231 = vadd.f32 0.0, %v230
    %v232 = vpop.f32.mrb[0].mxu0
    %233 = vmatprep.mubr.f32.mxu0 0.0
    %234 = vmatmul.mubr.f32.gmra.mrb[0].mxu0 %v101
    %v235 = vpop.f32.mrb[0].mxu0
    %v236 = vadd.f32 0.0, %v235
    %v237 = vpop.f32.mrb[0].mxu0
    %238 = vmatprep.mubr.f32.mxu0 0.0
    %239 = vmatmul.mubr.f32.gmra.mrb[0].mxu0 %v102
    %v240 = vpop.f32.mrb[0].mxu0
    %v241 = vadd.f32 0.0, %v240
    %v242 = vpop.f32.mrb[0].mxu0
    %243 = vmatprep.mubr.f32.mxu0 0.0
    %244 = vmatmul.mubr.f32.gmra.mrb[0].mxu0 %v103
    %v245 = vpop.f32.mrb[0].mxu0
    %v246 = vadd.f32 0.0, %v245
    %v247 = vpop.f32.mrb[0].mxu0
    %248 = vmatprep.mubr.f32.mxu0 0.0
    %249 = vmatmul.mubr.f32.gmra.mrb[0].mxu0 %v104
    %v250 = vpop.f32.mrb[0].mxu0
    %v251 = vadd.f32 0.0, %v250
    %v252 = vpop.f32.mrb[0].mxu0
    %253 = vmatprep.mubr.f32.mxu0 0.0
    %254 = vmatmul.mubr.f32.gmra.mrb[0].mxu0 %v105
    %v255 = vpop.f32.mrb[0].mxu0
    %v256 = vadd.f32 0.0, %v255
    %v257 = vpop.f32.mrb[0].mxu0
    %258 = vmatprep.mubr.f32.mxu0 0.0
    %259 = vmatmul.mubr.f32.gmra.mrb[0].mxu0 %v106
    %v260 = vpop.f32.mrb[0].mxu0
    %v261 = vadd.f32 0.0, %v260
    %v262 = vpop.f32.mrb[0].mxu0
    %263 = vmatprep.mubr.f32.mxu0 0.0
    %264 = vmatmul.mubr.f32.gmra.mrb[0].mxu0 %v107
    %v265 = vpop.f32.mrb[0].mxu0
    %v266 = vadd.f32 0.0, %v265
    %v267 = vpop.f32.mrb[0].mxu0
    %268 = vdwg.mxu0
    %v269 = vadd.f32 %v76, %v191
    %v270 = vadd.f32 %v77, %v196
    %v271 = vadd.f32 %v78, %v201
    %v272 = vadd.f32 %v79, %v206
    %v273 = vadd.f32 %v80, %v211
    %v274 = vadd.f32 %v81, %v216
    %v275 = vadd.f32 %v82, %v221
    %v276 = vadd.f32 %v83, %v226
    %v277 = vadd.f32 %v84, %v231
    %v278 = vadd.f32 %v85, %v236
    %v279 = vadd.f32 %v86, %v241
    %v280 = vadd.f32 %v87, %v246
    %v281 = vadd.f32 %v88, %v251
    %v282 = vadd.f32 %v89, %v256
    %v283 = vadd.f32 %v90, %v261
    %v284 = vadd.f32 %v91, %v266
    %285 = vst [vmem:[#allocation2] sm:$0xff] %v269
    %286 = vst [vmem:[#allocation2 + $0x8] sm:$0xff] %v270
    %287 = vst [vmem:[#allocation2 + $0x10] sm:$0xff] %v271
    %288 = vst [vmem:[#allocation2 + $0x18] sm:$0xff] %v272
    %289 = vst [vmem:[#allocation2 + $0x20] sm:$0xff] %v273
    %290 = vst [vmem:[#allocation2 + $0x28] sm:$0xff] %v274
    %291 = vst [vmem:[#allocation2 + $0x30] sm:$0xff] %v275
    %292 = vst [vmem:[#allocation2 + $0x38] sm:$0xff] %v276
    %293 = vst [vmem:[#allocation2 + $0x40] sm:$0xff] %v277
    %294 = vst [vmem:[#allocation2 + $0x48] sm:$0xff] %v278
    %295 = vst [vmem:[#allocation2 + $0x50] sm:$0xff] %v279
    %296 = vst [vmem:[#allocation2 + $0x58] sm:$0xff] %v280
    %297 = vst [vmem:[#allocation2 + $0x60] sm:$0xff] %v281
    %298 = vst [vmem:[#allocation2 + $0x68] sm:$0xff] %v282
    %299 = vst [vmem:[#allocation2 + $0x70] sm:$0xff] %v283
    %300 = vst [vmem:[#allocation2 + $0x78] sm:$0xff] %v284
    // Predicated region
    $region30: #{tpu_custom_call.1} parent=1 // pred_check
      %p301 = pneg %p56
    $region31: #{tpu_custom_call.1} parent=1 // pred_check_branch
      %303 = sbr.rel (%p301) target = $region33
    $region32: #{tpu_custom_call.1} parent=1 // pred_region
      %v304 = vld [vmem:[#allocation2] sm:$0xff]
      %v305 = vld [vmem:[#allocation2 + $0x8] sm:$0xff]
      %v306 = vld [vmem:[#allocation2 + $0x10] sm:$0xff]
      %v307 = vld [vmem:[#allocation2 + $0x18] sm:$0xff]
      %v308 = vld [vmem:[#allocation2 + $0x20] sm:$0xff]
      %v309 = vld [vmem:[#allocation2 + $0x28] sm:$0xff]
      %v310 = vld [vmem:[#allocation2 + $0x30] sm:$0xff]
      %v311 = vld [vmem:[#allocation2 + $0x38] sm:$0xff]
      %v312 = vld [vmem:[#allocation2 + $0x40] sm:$0xff]
      %v313 = vld [vmem:[#allocation2 + $0x48] sm:$0xff]
      %v314 = vld [vmem:[#allocation2 + $0x50] sm:$0xff]
      %v315 = vld [vmem:[#allocation2 + $0x58] sm:$0xff]
      %v316 = vld [vmem:[#allocation2 + $0x60] sm:$0xff]
      %v317 = vld [vmem:[#allocation2 + $0x68] sm:$0xff]
      %v318 = vld [vmem:[#allocation2 + $0x70] sm:$0xff]
      %v319 = vld [vmem:[#allocation2 + $0x78] sm:$0xff]
      %v320 = vld [vmem:[#allocation8] sm:$0xff]
      %v321 = vld [vmem:[#allocation8 + $0x8] sm:$0xff]
      %v322 = vld [vmem:[#allocation8 + $0x10] sm:$0xff]
      %v323 = vld [vmem:[#allocation8 + $0x18] sm:$0xff]
      %v324 = vld [vmem:[#allocation8 + $0x20] sm:$0xff]
      %v325 = vld [vmem:[#allocation8 + $0x28] sm:$0xff]
      %v326 = vld [vmem:[#allocation8 + $0x30] sm:$0xff]
      %v327 = vld [vmem:[#allocation8 + $0x38] sm:$0xff]
      %v328 = vld [vmem:[#allocation8 + $0x40] sm:$0xff]
      %v329 = vld [vmem:[#allocation8 + $0x48] sm:$0xff]
      %v330 = vld [vmem:[#allocation8 + $0x50] sm:$0xff]
      %v331 = vld [vmem:[#allocation8 + $0x58] sm:$0xff]
      %v332 = vld [vmem:[#allocation8 + $0x60] sm:$0xff]
      %v333 = vld [vmem:[#allocation8 + $0x68] sm:$0xff]
      %v334 = vld [vmem:[#allocation8 + $0x70] sm:$0xff]
      %v335 = vld [vmem:[#allocation8 + $0x78] sm:$0xff]
      %336 = vmatprep.subr.mxu0 0.0
      %337 = vmatpush1.msra.mxu0 %v320
      %338 = vmatprep.subr.mxu0 0.0
      %339 = vmatpush1.msra.mxu0 %v321
      %340 = vmatprep.subr.mxu0 0.0
      %341 = vmatpush1.msra.mxu0 %v322
      %342 = vmatprep.subr.mxu0 0.0
      %343 = vmatpush1.msra.mxu0 %v323
      %344 = vmatprep.subr.mxu0 0.0
      %345 = vmatpush1.msra.mxu0 %v324
      %346 = vmatprep.subr.mxu0 0.0
      %347 = vmatpush1.msra.mxu0 %v325
      %348 = vmatprep.subr.mxu0 0.0
      %349 = vmatpush1.msra.mxu0 %v326
      %350 = vmatprep.subr.mxu0 0.0
      %351 = vmatpush1.msra.mxu0 %v327
      %352 = vmatprep.subr.mxu0 0.0
      %353 = vmatpush1.msra.mxu0 %v328
      %354 = vmatprep.subr.mxu0 0.0
      %355 = vmatpush1.msra.mxu0 %v329
      %356 = vmatprep.subr.mxu0 0.0
      %357 = vmatpush1.msra.mxu0 %v330
      %358 = vmatprep.subr.mxu0 0.0
      %359 = vmatpush1.msra.mxu0 %v331
      %360 = vmatprep.subr.mxu0 0.0
      %361 = vmatpush1.msra.mxu0 %v332
      %362 = vmatprep.subr.mxu0 0.0
      %363 = vmatpush1.msra.mxu0 %v333
      %364 = vmatprep.subr.mxu0 0.0
      %365 = vmatpush1.msra.mxu0 %v334
      %366 = vmatprep.subr.mxu0 0.0
      %367 = vmatpush1.msra.mxu0 %v335
      %368 = vmatprep.subr.mxu0 0.0
      %369 = vmatpush1.msra.mxu0 0.0
      %370 = vmatprep.subr.mxu0 0.0
      %371 = vmatpush1.msra.mxu0 0.0
      %372 = vmatprep.subr.mxu0 0.0
      %373 = vmatpush1.msra.mxu0 0.0
      %374 = vmatprep.subr.mxu0 0.0
      %375 = vmatpush1.msra.mxu0 0.0
      %376 = vmatprep.subr.mxu0 0.0
      %377 = vmatpush1.msra.mxu0 0.0
      %378 = vmatprep.subr.mxu0 0.0
      %379 = vmatpush1.msra.mxu0 0.0
      %380 = vmatprep.subr.mxu0 0.0
      %381 = vmatpush1.msra.mxu0 0.0
      %382 = vmatprep.subr.mxu0 0.0
      %383 = vmatpush1.msra.mxu0 0.0
      %384 = vmatprep.subr.mxu0 0.0
      %385 = vmatpush1.msra.mxu0 0.0
      %386 = vmatprep.subr.mxu0 0.0
      %387 = vmatpush1.msra.mxu0 0.0
      %388 = vmatprep.subr.mxu0 0.0
      %389 = vmatpush1.msra.mxu0 0.0
      %390 = vmatprep.subr.mxu0 0.0
      %391 = vmatpush1.msra.mxu0 0.0
      %392 = vmatprep.subr.mxu0 0.0
      %393 = vmatpush1.msra.mxu0 0.0
      %394 = vmatprep.subr.mxu0 0.0
      %395 = vmatpush1.msra.mxu0 0.0
      %396 = vmatprep.subr.mxu0 0.0
      %397 = vmatpush1.msra.mxu0 0.0
      %398 = vmatprep.subr.mxu0 0.0
      %399 = vmatpush1.msra.mxu0 0.0
      %400 = vmatprep.mubr.f32.mxu0 0.0
      %401 = vmatmul.mubr.f32.gmra.mrb[0].mxu0 %v304
      %v402 = vpop.f32.mrb[0].mxu0
      %v403 = vadd.f32 0.0, %v402
      %v404 = vpop.f32.mrb[0].mxu0
      %405 = vmatprep.mubr.f32.mxu0 0.0
      %406 = vmatmul.mubr.f32.gmra.mrb[0].mxu0 %v305
      %v407 = vpop.f32.mrb[0].mxu0
      %v408 = vadd.f32 0.0, %v407
      %v409 = vpop.f32.mrb[0].mxu0
      %410 = vmatprep.mubr.f32.mxu0 0.0
      %411 = vmatmul.mubr.f32.gmra.mrb[0].mxu0 %v306
      %v412 = vpop.f32.mrb[0].mxu0
      %v413 = vadd.f32 0.0, %v412
      %v414 = vpop.f32.mrb[0].mxu0
      %415 = vmatprep.mubr.f32.mxu0 0.0
      %416 = vmatmul.mubr.f32.gmra.mrb[0].mxu0 %v307
      %v417 = vpop.f32.mrb[0].mxu0
      %v418 = vadd.f32 0.0, %v417
      %v419 = vpop.f32.mrb[0].mxu0
      %420 = vmatprep.mubr.f32.mxu0 0.0
      %421 = vmatmul.mubr.f32.gmra.mrb[0].mxu0 %v308
      %v422 = vpop.f32.mrb[0].mxu0
      %v423 = vadd.f32 0.0, %v422
      %v424 = vpop.f32.mrb[0].mxu0
      %425 = vmatprep.mubr.f32.mxu0 0.0
      %426 = vmatmul.mubr.f32.gmra.mrb[0].mxu0 %v309
      %v427 = vpop.f32.mrb[0].mxu0
      %v428 = vadd.f32 0.0, %v427
      %v429 = vpop.f32.mrb[0].mxu0
      %430 = vmatprep.mubr.f32.mxu0 0.0
      %431 = vmatmul.mubr.f32.gmra.mrb[0].mxu0 %v310
      %v432 = vpop.f32.mrb[0].mxu0
      %v433 = vadd.f32 0.0, %v432
      %v434 = vpop.f32.mrb[0].mxu0
      %435 = vmatprep.mubr.f32.mxu0 0.0
      %436 = vmatmul.mubr.f32.gmra.mrb[0].mxu0 %v311
      %v437 = vpop.f32.mrb[0].mxu0
      %v438 = vadd.f32 0.0, %v437
      %v439 = vpop.f32.mrb[0].mxu0
      %440 = vmatprep.mubr.f32.mxu0 0.0
      %441 = vmatmul.mubr.f32.gmra.mrb[0].mxu0 %v312
      %v442 = vpop.f32.mrb[0].mxu0
      %v443 = vadd.f32 0.0, %v442
      %v444 = vpop.f32.mrb[0].mxu0
      %445 = vmatprep.mubr.f32.mxu0 0.0
      %446 = vmatmul.mubr.f32.gmra.mrb[0].mxu0 %v313
      %v447 = vpop.f32.mrb[0].mxu0
      %v448 = vadd.f32 0.0, %v447
      %v449 = vpop.f32.mrb[0].mxu0
      %450 = vmatprep.mubr.f32.mxu0 0.0
      %451 = vmatmul.mubr.f32.gmra.mrb[0].mxu0 %v314
      %v452 = vpop.f32.mrb[0].mxu0
      %v453 = vadd.f32 0.0, %v452
      %v454 = vpop.f32.mrb[0].mxu0
      %455 = vmatprep.mubr.f32.mxu0 0.0
      %456 = vmatmul.mubr.f32.gmra.mrb[0].mxu0 %v315
      %v457 = vpop.f32.mrb[0].mxu0
      %v458 = vadd.f32 0.0, %v457
      %v459 = vpop.f32.mrb[0].mxu0
      %460 = vmatprep.mubr.f32.mxu0 0.0
      %461 = vmatmul.mubr.f32.gmra.mrb[0].mxu0 %v316
      %v462 = vpop.f32.mrb[0].mxu0
      %v463 = vadd.f32 0.0, %v462
      %v464 = vpop.f32.mrb[0].mxu0
      %465 = vmatprep.mubr.f32.mxu0 0.0
      %466 = vmatmul.mubr.f32.gmra.mrb[0].mxu0 %v317
      %v467 = vpop.f32.mrb[0].mxu0
      %v468 = vadd.f32 0.0, %v467
      %v469 = vpop.f32.mrb[0].mxu0
      %470 = vmatprep.mubr.f32.mxu0 0.0
      %471 = vmatmul.mubr.f32.gmra.mrb[0].mxu0 %v318
      %v472 = vpop.f32.mrb[0].mxu0
      %v473 = vadd.f32 0.0, %v472
      %v474 = vpop.f32.mrb[0].mxu0
      %475 = vmatprep.mubr.f32.mxu0 0.0
      %476 = vmatmul.mubr.f32.gmra.mrb[0].mxu0 %v319
      %v477 = vpop.f32.mrb[0].mxu0
      %v478 = vadd.f32 0.0, %v477
      %v479 = vpop.f32.mrb[0].mxu0
      %480 = vdwg.mxu0
      %v481 = vmax.f32 %v403, 0.0
      %v482 = vmax.f32 %v408, 0.0
      %v483 = vmax.f32 %v413, 0.0
      %v484 = vmax.f32 %v418, 0.0
      %v485 = vmax.f32 %v423, 0.0
      %v486 = vmax.f32 %v428, 0.0
      %v487 = vmax.f32 %v433, 0.0
      %v488 = vmax.f32 %v438, 0.0
      %v489 = vmax.f32 %v443, 0.0
      %v490 = vmax.f32 %v448, 0.0
      %v491 = vmax.f32 %v453, 0.0
      %v492 = vmax.f32 %v458, 0.0
      %v493 = vmax.f32 %v463, 0.0
      %v494 = vmax.f32 %v468, 0.0
      %v495 = vmax.f32 %v473, 0.0
      %v496 = vmax.f32 %v478, 0.0
      %497 = vst [vmem:[#allocation9] sm:$0xff] %v481
      %498 = vst [vmem:[#allocation9 + $0x8] sm:$0xff] %v482
      %499 = vst [vmem:[#allocation9 + $0x10] sm:$0xff] %v483
      %500 = vst [vmem:[#allocation9 + $0x18] sm:$0xff] %v484
      %501 = vst [vmem:[#allocation9 + $0x20] sm:$0xff] %v485
      %502 = vst [vmem:[#allocation9 + $0x28] sm:$0xff] %v486
      %503 = vst [vmem:[#allocation9 + $0x30] sm:$0xff] %v487
      %504 = vst [vmem:[#allocation9 + $0x38] sm:$0xff] %v488
      %505 = vst [vmem:[#allocation9 + $0x40] sm:$0xff] %v489
      %506 = vst [vmem:[#allocation9 + $0x48] sm:$0xff] %v490
      %507 = vst [vmem:[#allocation9 + $0x50] sm:$0xff] %v491
      %508 = vst [vmem:[#allocation9 + $0x58] sm:$0xff] %v492
      %509 = vst [vmem:[#allocation9 + $0x60] sm:$0xff] %v493
      %510 = vst [vmem:[#allocation9 + $0x68] sm:$0xff] %v494
      %511 = vst [vmem:[#allocation9 + $0x70] sm:$0xff] %v495
      %512 = vst [vmem:[#allocation9 + $0x78] sm:$0xff] %v496
    $region33: #{tpu_custom_call.1} parent=1 // pred_fallthru
      _
    // Predicated region
    $region34: #{tpu_custom_call.1} parent=1 // pred_check
      _
    $region35: #{tpu_custom_call.1} parent=1 // pred_check_branch
      %514 = sbr.rel (0) target = $region37
    $region36: #{tpu_custom_call.1} parent=1 // pred_region
      %s516 = ssub.s32 2048, 2048
      %517 = vsyncadd [#allocation5], %s516
      %s518 = sshll.u32 [#allocation9], 4
      %s519 = int_to_ptr.vmem [resolvable:$true] %s518
      %524 = dma.vmem_to_hbm [thread:$0]  %s519, 2048, %s3, [#allocation5], 128, 128, 8
    $region37: #{tpu_custom_call.1} parent=1 // pred_fallthru
      _
    // Predicated region
    $region38: #{tpu_custom_call.1} parent=1 // pred_check
      _
    $region39: #{tpu_custom_call.1} parent=1 // pred_check_branch
      %526 = sbr.rel (0) target = $region41
    $region40: #{tpu_custom_call.1} parent=1 // pred_region
      %527 = dma.done [#allocation5], 2048
    $region41: #{tpu_custom_call.1} parent=1 // pred_fallthru
      _
    %528 = vsyncpa [#allocation4], 1
    %529 = vsyncpa [#allocation7], 1
    %530 = vsyncpa [#allocation5], 1

</llo_original>
